<compile_context>
chip_gen: v6e
topology: v6e:2x2x1
jax: 0.10.0
libtpu: 0.0.40
codegen_flags: <defaults>
</compile_context>

<pallas_src>
import jax
import jax.numpy as jnp
import numpy as np
from jax.experimental import pallas as pl
from jax.experimental.pallas import tpu as pltpu

EPS = 1e-5
LANE = 128  # TPU lane width; every packed matrix dimension is padded to 128.


# ----------------------------------------------------------------------------
# Parameter folding / packing helpers (plain JAX, run once at setup).
# ----------------------------------------------------------------------------
def fold_bn_into_linear(w, b, gamma, beta, rm, rv):
    """Fold eval-mode BatchNorm1d into the preceding Linear.

    w: (in, out), b: (out,). Returns (w', b') s.t. BN(x @ w + b) == x @ w' + b'.
    """
    s = gamma / jnp.sqrt(rv + EPS)
    return w * s[None, :], (b - rm) * s + beta


def block_diag(blocks):
    """Dense block-diagonal of 2-D blocks."""
    rows = sum(b.shape[0] for b in blocks)
    cols = sum(b.shape[1] for b in blocks)
    out = jnp.zeros((rows, cols), blocks[0].dtype)
    r = c = 0
    for b in blocks:
        out = out.at[r:r + b.shape[0], c:c + b.shape[1]].set(b)
        r += b.shape[0]
        c += b.shape[1]
    return out


def pack_encoder_params(sm_params, sv_params, cm_params, cv_params,
                        n_site, chans, n_clone, n_dim,
                        weight_dtype=jnp.bfloat16):
    """Pack the whole encoder into two lane-padded slabs.

      w_slab  : (L, 128, 128) weight_dtype, L = len(chans) + 2
                layer 0      : [W_mean | W_var]            (both paths read x)
                layer 1..    : block_diag(W_mean, W_var)   (independent paths)
                head layer 1 : block_diag(concat_c W1m_c, concat_c W1v_c)
                head layer 2 : block_diag(W2m_0..nc-1, W2v_0..nc-1)
      ba_slab : (2L, 128) f32, row 2i = bias_i, row 2i+1 = alpha_i
                (alpha of the last layer is unused: no PReLU there)

    Output columns of the last layer are ordered
      [mean clone 0..nc-1, var clone 0..nc-1] x n_dim,
    so (B, 2*nc*n_dim) reshapes straight into torch.stack(dim=1).
    """
    n_layers = len(chans)
    L = n_layers + 2

    layer_w, layer_b, layer_a = [], [], []
    # Shared trunk: mean and var paths fused side by side.
    for li, ((wm, bm, am), (wv, bv, av)) in enumerate(zip(sm_params, sv_params)):
        if li == 0:
            w = jnp.concatenate([wm, wv], axis=1)       # same input -> concat cols
        else:
            w = block_diag([wm, wv])                    # independent paths
        layer_w.append(w)
        layer_b.append(jnp.concatenate([bm, bv]))
        layer_a.append(jnp.concatenate([am, av]))

    # Head layer 1: per-path column-concat over clones, block-diag over paths.
    w1m = jnp.concatenate([cm_params[c][0] for c in range(n_clone)], axis=1)
    w1v = jnp.concatenate([cv_params[c][0] for c in range(n_clone)], axis=1)
    layer_w.append(block_diag([w1m, w1v]))
    layer_b.append(jnp.concatenate([cm_params[c][1] for c in range(n_clone)]
                                   + [cv_params[c][1] for c in range(n_clone)]))
    layer_a.append(jnp.concatenate([cm_params[c][2] for c in range(n_clone)]
                                   + [cv_params[c][2] for c in range(n_clone)]))

    # Head layer 2: block-diag over all 2*nc heads (no PReLU afterwards).
    layer_w.append(block_diag([cm_params[c][3] for c in range(n_clone)]
                              + [cv_params[c][3] for c in range(n_clone)]))
    layer_b.append(jnp.concatenate([cm_params[c][4] for c in range(n_clone)]
                                   + [cv_params[c][4] for c in range(n_clone)]))
    layer_a.append(jnp.zeros_like(layer_b[-1]))         # unused (no PReLU)

    assert len(layer_w) == L
    w_slab = jnp.zeros((L, LANE, LANE), weight_dtype)
    ba_slab = jnp.zeros((2 * L, LANE), jnp.float32)
    for i, (w, b, a) in enumerate(zip(layer_w, layer_b, layer_a)):
        ri, ci = w.shape
        assert ri <= LANE and ci <= LANE, "packed layer exceeds one 128-lane tile"
        w_slab = w_slab.at[i, :ri, :ci].set(w.astype(weight_dtype))
        ba_slab = ba_slab.at[2 * i, :ci].set(b.astype(jnp.float32))
        ba_slab = ba_slab.at[2 * i + 1, :ci].set(a.astype(jnp.float32))
    return w_slab, ba_slab


# ----------------------------------------------------------------------------
# Fused encoder forward: one pallas_call, 3 DMAs, everything lane-dense.
# ----------------------------------------------------------------------------
def make_encoder_forward(B, n_site, chans, n_clone, n_dim, *, batch_tile=256):
    n_layers = len(chans)
    L = n_layers + 2
    out_cols = 2 * n_clone * n_dim
    assert n_site <= LANE and out_cols <= LANE

    # Batch padding / tiling: single block for small B, 256-row tiles (grid
    # axis marked "parallel" -> sharded across v7x's 2 TensorCores) for big B.
    B_pad = ((B + 7) // 8) * 8
    if B_pad > batch_tile:
        B_pad = ((B + batch_tile - 1) // batch_tile) * batch_tile
        TB = batch_tile
    else:
        TB = B_pad
    grid = (B_pad // TB,)

    def kernel(x_ref, w_ref, ba_ref, out_ref):
        ba = ba_ref[...]                     # (2L, 128) f32 (one vreg-ish)
        h = x_ref[...]                       # (TB, 128) f32, lane-dense
        for i in range(L):                   # statically unrolled, L is tiny
            w = w_ref[i]                     # (128, 128) bf16 weight tile
            h = jnp.dot(h.astype(w.dtype), w,
                        preferred_element_type=jnp.float32)
            h = h + ba[2 * i:2 * i + 1, :]               # bias (f32, VPU)
            if i < L - 1:                                # PReLU except last layer
                a = ba[2 * i + 1:2 * i + 2, :]
                h = jnp.where(h >= 0.0, h, a * h)
        out_ref[...] = h                     # unmasked 128-lane store

    call = pl.pallas_call(
        kernel,
        grid=grid,
        in_specs=[
            pl.BlockSpec((TB, LANE), lambda i: (i, 0)),          # x (per-tile)
            pl.BlockSpec((L, LANE, LANE), lambda i: (0, 0, 0)),  # weight slab
            pl.BlockSpec((2 * L, LANE), lambda i: (0, 0)),       # bias/alpha slab
        ],
        out_specs=pl.BlockSpec((TB, LANE), lambda i: (i, 0)),
        out_shape=jax.ShapeDtypeStruct((B_pad, LANE), jnp.float32),
        compiler_params=pltpu.CompilerParams(
            dimension_semantics=("parallel",)),
    )

    @jax.jit
    def fwd(x, w_slab, ba_slab):
        # Lane/sublane padding of the input is a tiny fused XLA op.
        xp = jnp.zeros((B_pad, LANE), jnp.float32).at[:B, :n_site].set(x)
        out = call(xp, w_slab, ba_slab)                  # (B_pad, 128) lane-packed
        out = out[:B, :out_cols]
        split = n_clone * n_dim
        clonal_mean = out[:, :split].reshape(B, n_clone, n_dim)
        clonal_var = out[:, split:].reshape(B, n_clone, n_dim)
        return clonal_mean, clonal_var                   # matches torch.stack(dim=1)

    return fwd


# ----------------------------------------------------------------------------
# Deterministic synthetic parameter construction + pure-JAX f32 reference.
# ----------------------------------------------------------------------------
def init_shared_path(key, n_site, chans):
    """Returns list of (folded_W (in,out), folded_b (out,), alpha (out,))."""
    params = []
    dims = [n_site] + list(chans)
    for li in range(len(chans)):
        cin, cout = dims[li], dims[li + 1]
        key, k1, k2, k3, k4, k5, k6, k7 = jax.random.split(key, 8)
        w = jax.random.normal(k1, (cin, cout), jnp.float32) * 0.1
        b = jax.random.normal(k2, (cout,), jnp.float32) * 0.1
        gamma = 1.0 + 0.1 * jax.random.normal(k3, (cout,), jnp.float32)
        beta = 0.1 * jax.random.normal(k4, (cout,), jnp.float32)
        rm = 0.1 * jax.random.normal(k5, (cout,), jnp.float32)
        rv = jax.random.uniform(k6, (cout,), jnp.float32, 0.5, 1.5)
        alpha = jax.random.uniform(k7, (cout,), jnp.float32, 0.1, 0.4)
        wf, bf = fold_bn_into_linear(w, b, gamma, beta, rm, rv)
        params.append((wf, bf, alpha))
    return params, key


def init_clonal_path(key, C, H, n_clone, n_dim):
    """Per-clone (folded_W1 (C,H), b1 (H,), alpha (H,), W2 (H,n_dim), b2 (n_dim,))."""
    params = []
    for _c in range(n_clone):
        key, k1, k2, k3, k4, k5, k6, k7, k8, k9 = jax.random.split(key, 10)
        w1 = jax.random.normal(k1, (C, H), jnp.float32) * 0.1
        b1 = jax.random.normal(k2, (H,), jnp.float32) * 0.1
        gamma = 1.0 + 0.1 * jax.random.normal(k3, (H,), jnp.float32)
        beta = 0.1 * jax.random.normal(k4, (H,), jnp.float32)
        rm = 0.1 * jax.random.normal(k5, (H,), jnp.float32)
        rv = jax.random.uniform(k6, (H,), jnp.float32, 0.5, 1.5)
        alpha = jax.random.uniform(k7, (H,), jnp.float32, 0.1, 0.4)
        w2 = jax.random.normal(k8, (H, n_dim), jnp.float32) * 0.1
        b2 = jax.random.normal(k9, (n_dim,), jnp.float32) * 0.1
        w1f, b1f = fold_bn_into_linear(w1, b1, gamma, beta, rm, rv)
        params.append((w1f, b1f, alpha, w2, b2))
    return params, key


def reference_forward(x, sm_params, sv_params, cm_params, cv_params):
    """Pure f32 reference with the same folded-BN eval-mode semantics."""
    def run_shared(h, params):
        for (w, b, a) in params:
            h = h @ w + b[None, :]
            h = jnp.where(h >= 0.0, h, a[None, :] * h)
        return h

    sm = run_shared(x, sm_params)
    sv = run_shared(x, sv_params)

    def run_clonal(h, params):
        outs = []
        for (w1, b1, a1, w2, b2) in params:
            t = h @ w1 + b1[None, :]
            t = jnp.where(t >= 0.0, t, a1[None, :] * t)
            outs.append(t @ w2 + b2[None, :])
        return jnp.stack(outs, axis=1)

    return run_clonal(sm, cm_params), run_clonal(sv, cv_params)


if __name__ == "__main__":
    # Small shapes implied by the module's forward:
    B = 8                      # batch
    n_site = 16                # input features
    shared_fc_chans = [32, 32]
    n_clone = 3
    n_dim = 2
    p_drop = 0.1               # inference: dropout is identity
    C = shared_fc_chans[-1]
    H = C // 4

    key = jax.random.PRNGKey(0)
    key, kx = jax.random.split(key)
    x = jax.random.normal(kx, (B, n_site), jnp.float32)

    sm_params, key = init_shared_path(key, n_site, shared_fc_chans)
    sv_params, key = init_shared_path(key, n_site, shared_fc_chans)
    cm_params, key = init_clonal_path(key, C, H, n_clone, n_dim)
    cv_params, key = init_clonal_path(key, C, H, n_clone, n_dim)

    # Pack once (BN already folded in init_*): 2 slabs total.
    w_slab, ba_slab = pack_encoder_params(
        sm_params, sv_params, cm_params, cv_params,
        n_site, shared_fc_chans, n_clone, n_dim,
        weight_dtype=jnp.bfloat16)
    encoder_fwd = make_encoder_forward(B, n_site, shared_fc_chans, n_clone, n_dim)

    clonal_mean, clonal_var = encoder_fwd(x, w_slab, ba_slab)
    clonal_mean = jax.block_until_ready(clonal_mean)
    clonal_var = jax.block_until_ready(clonal_var)

    assert clonal_mean.shape == (B, n_clone, n_dim)
    assert clonal_var.shape == (B, n_clone, n_dim)

    ref_mean, ref_var = reference_forward(x, sm_params, sv_params,
                                          cm_params, cv_params)
    ref_mean = jax.block_until_ready(ref_mean)
    ref_var = jax.block_until_ready(ref_var)

    # Tolerance accounts for bf16 weight/activation quantization on the MXU
    # (f32 accumulation); the f32 reference is the exact eval-mode semantics.
    np.testing.assert_allclose(np.asarray(clonal_mean), np.asarray(ref_mean),
                               rtol=3e-2, atol=3e-3)
    np.testing.assert_allclose(np.asarray(clonal_var), np.asarray(ref_var),
                               rtol=3e-2, atol=3e-3)

    print("KERNEL_OK")
</pallas_src>

<mosaic_0001>
module attributes {stable_mosaic.version = 11 : i64} {
  func.func @kernel(%arg0: i32, %arg1: memref<8x128xf32, #tpu.memory_space<vmem>>, %arg2: memref<4x128x128xbf16, #tpu.memory_space<vmem>>, %arg3: memref<8x128xf32, #tpu.memory_space<vmem>>, %arg4: memref<8x128xf32, #tpu.memory_space<vmem>>) attributes {dimension_semantics = [#tpu.dimension_semantics<parallel>], iteration_bounds = array<i64: 1>, scalar_prefetch = 0 : i64, scratch_operands = 0 : i64, tpu.core_type = #tpu.core_type<tc>, window_params = [{transform_indices = @transform_0, window_bounds = array<i64: 8, 128>}, {pipeline_mode = #tpu.pipeline_mode<synchronous>, transform_indices = @transform_1, window_bounds = array<i64: 4, 128, 128>}, {pipeline_mode = #tpu.pipeline_mode<synchronous>, transform_indices = @transform_2, window_bounds = array<i64: 8, 128>}, {transform_indices = @transform_3, window_bounds = array<i64: 8, 128>}]} {
    %c0 = arith.constant 0 : index
    %c0_0 = arith.constant 0 : index
    %0 = vector.load %arg3[%c0, %c0_0] : memref<8x128xf32, #tpu.memory_space<vmem>>, vector<8x128xf32>
    %c0_1 = arith.constant 0 : index
    %c0_2 = arith.constant 0 : index
    %1 = vector.load %arg1[%c0_1, %c0_2] : memref<8x128xf32, #tpu.memory_space<vmem>>, vector<8x128xf32>
    %c0_3 = arith.constant 0 : index
    %c0_4 = arith.constant 0 : index
    %c0_5 = arith.constant 0 : index
    %2 = vector.load %arg2[%c0_3, %c0_4, %c0_5] : memref<4x128x128xbf16, #tpu.memory_space<vmem>>, vector<1x128x128xbf16>
    %3 = vector.shape_cast %2 : vector<1x128x128xbf16> to vector<128x128xbf16>
    %4 = arith.truncf %1 : vector<8x128xf32> to vector<8x128xbf16>
    %cst = arith.constant dense<0.000000e+00> : vector<8x128xf32>
    %5 = tpu.matmul %4, %3, %cst {dimension_numbers = #tpu.dot_dimension_numbers<[1], [0], [0], [1], [0, 0, 1, 1], [], []>} : vector<8x128xbf16>, vector<128x128xbf16>, vector<8x128xf32> -> vector<8x128xf32>
    %6 = vector.extract_strided_slice %0 {offsets = [0, 0], sizes = [1, 128], strides = [1, 1]} : vector<8x128xf32> to vector<1x128xf32>
    %7 = vector.broadcast %6 : vector<1x128xf32> to vector<8x128xf32>
    %8 = arith.addf %5, %7 : vector<8x128xf32>
    %9 = vector.extract_strided_slice %0 {offsets = [1, 0], sizes = [1, 128], strides = [1, 1]} : vector<8x128xf32> to vector<1x128xf32>
    %cst_6 = arith.constant 0.000000e+00 : f32
    %10 = vector.broadcast %cst_6 : f32 to vector<8x128xf32>
    %11 = arith.cmpf oge, %8, %10 : vector<8x128xf32>
    %12 = vector.broadcast %9 : vector<1x128xf32> to vector<8x128xf32>
    %13 = arith.mulf %12, %8 : vector<8x128xf32>
    %14 = arith.select %11, %8, %13 : vector<8x128xi1>, vector<8x128xf32>
    %c1 = arith.constant 1 : index
    %c0_7 = arith.constant 0 : index
    %c0_8 = arith.constant 0 : index
    %15 = vector.load %arg2[%c1, %c0_7, %c0_8] : memref<4x128x128xbf16, #tpu.memory_space<vmem>>, vector<1x128x128xbf16>
    %16 = vector.shape_cast %15 : vector<1x128x128xbf16> to vector<128x128xbf16>
    %17 = arith.truncf %14 : vector<8x128xf32> to vector<8x128xbf16>
    %cst_9 = arith.constant dense<0.000000e+00> : vector<8x128xf32>
    %18 = tpu.matmul %17, %16, %cst_9 {dimension_numbers = #tpu.dot_dimension_numbers<[1], [0], [0], [1], [0, 0, 1, 1], [], []>} : vector<8x128xbf16>, vector<128x128xbf16>, vector<8x128xf32> -> vector<8x128xf32>
    %19 = vector.extract_strided_slice %0 {offsets = [2, 0], sizes = [1, 128], strides = [1, 1]} : vector<8x128xf32> to vector<1x128xf32>
    %20 = vector.broadcast %19 : vector<1x128xf32> to vector<8x128xf32>
    %21 = arith.addf %18, %20 : vector<8x128xf32>
    %22 = vector.extract_strided_slice %0 {offsets = [3, 0], sizes = [1, 128], strides = [1, 1]} : vector<8x128xf32> to vector<1x128xf32>
    %cst_10 = arith.constant 0.000000e+00 : f32
    %23 = vector.broadcast %cst_10 : f32 to vector<8x128xf32>
    %24 = arith.cmpf oge, %21, %23 : vector<8x128xf32>
    %25 = vector.broadcast %22 : vector<1x128xf32> to vector<8x128xf32>
    %26 = arith.mulf %25, %21 : vector<8x128xf32>
    %27 = arith.select %24, %21, %26 : vector<8x128xi1>, vector<8x128xf32>
    %c2 = arith.constant 2 : index
    %c0_11 = arith.constant 0 : index
    %c0_12 = arith.constant 0 : index
    %28 = vector.load %arg2[%c2, %c0_11, %c0_12] : memref<4x128x128xbf16, #tpu.memory_space<vmem>>, vector<1x128x128xbf16>
    %29 = vector.shape_cast %28 : vector<1x128x128xbf16> to vector<128x128xbf16>
    %30 = arith.truncf %27 : vector<8x128xf32> to vector<8x128xbf16>
    %cst_13 = arith.constant dense<0.000000e+00> : vector<8x128xf32>
    %31 = tpu.matmul %30, %29, %cst_13 {dimension_numbers = #tpu.dot_dimension_numbers<[1], [0], [0], [1], [0, 0, 1, 1], [], []>} : vector<8x128xbf16>, vector<128x128xbf16>, vector<8x128xf32> -> vector<8x128xf32>
    %32 = vector.extract_strided_slice %0 {offsets = [4, 0], sizes = [1, 128], strides = [1, 1]} : vector<8x128xf32> to vector<1x128xf32>
    %33 = vector.broadcast %32 : vector<1x128xf32> to vector<8x128xf32>
    %34 = arith.addf %31, %33 : vector<8x128xf32>
    %35 = vector.extract_strided_slice %0 {offsets = [5, 0], sizes = [1, 128], strides = [1, 1]} : vector<8x128xf32> to vector<1x128xf32>
    %cst_14 = arith.constant 0.000000e+00 : f32
    %36 = vector.broadcast %cst_14 : f32 to vector<8x128xf32>
    %37 = arith.cmpf oge, %34, %36 : vector<8x128xf32>
    %38 = vector.broadcast %35 : vector<1x128xf32> to vector<8x128xf32>
    %39 = arith.mulf %38, %34 : vector<8x128xf32>
    %40 = arith.select %37, %34, %39 : vector<8x128xi1>, vector<8x128xf32>
    %c3 = arith.constant 3 : index
    %c0_15 = arith.constant 0 : index
    %c0_16 = arith.constant 0 : index
    %41 = vector.load %arg2[%c3, %c0_15, %c0_16] : memref<4x128x128xbf16, #tpu.memory_space<vmem>>, vector<1x128x128xbf16>
    %42 = vector.shape_cast %41 : vector<1x128x128xbf16> to vector<128x128xbf16>
    %43 = arith.truncf %40 : vector<8x128xf32> to vector<8x128xbf16>
    %cst_17 = arith.constant dense<0.000000e+00> : vector<8x128xf32>
    %44 = tpu.matmul %43, %42, %cst_17 {dimension_numbers = #tpu.dot_dimension_numbers<[1], [0], [0], [1], [0, 0, 1, 1], [], []>} : vector<8x128xbf16>, vector<128x128xbf16>, vector<8x128xf32> -> vector<8x128xf32>
    %45 = vector.extract_strided_slice %0 {offsets = [6, 0], sizes = [1, 128], strides = [1, 1]} : vector<8x128xf32> to vector<1x128xf32>
    %46 = vector.broadcast %45 : vector<1x128xf32> to vector<8x128xf32>
    %47 = arith.addf %44, %46 : vector<8x128xf32>
    %c0_18 = arith.constant 0 : index
    %c0_19 = arith.constant 0 : index
    %48 = vector.load %arg4[%c0_18, %c0_19] : memref<8x128xf32, #tpu.memory_space<vmem>>, vector<8x128xf32>
    tpu.vector_store %arg4[%c0_18, %c0_19], %47 {strides = array<i32>} : memref<8x128xf32, #tpu.memory_space<vmem>>, vector<8x128xf32>,
    return
  }
  func.func @transform_0(%arg0: i32) -> (i32, i32) {
    %c0_i32 = arith.constant 0 : i32
    %c0_i32_0 = arith.constant 0 : i32
    return %arg0, %c0_i32 : i32, i32
  }
  func.func @transform_1(%arg0: i32) -> (i32, i32, i32) {
    %c0_i32 = arith.constant 0 : i32
    %c0_i32_0 = arith.constant 0 : i32
    %c0_i32_1 = arith.constant 0 : i32
    %c0_i32_2 = arith.constant 0 : i32
    return %c0_i32, %c0_i32_0, %c0_i32_1 : i32, i32, i32
  }
  func.func @transform_2(%arg0: i32) -> (i32, i32) {
    %c0_i32 = arith.constant 0 : i32
    %c0_i32_0 = arith.constant 0 : i32
    %c0_i32_1 = arith.constant 0 : i32
    return %c0_i32, %c0_i32_0 : i32, i32
  }
  func.func @transform_3(%arg0: i32) -> (i32, i32) {
    %c0_i32 = arith.constant 0 : i32
    %c0_i32_0 = arith.constant 0 : i32
    return %arg0, %c0_i32 : i32, i32
  }
}

</mosaic_0001>

<llo_original>
// kernel: fwd.1
$region0: #{fwd.1}
  #allocation0 [shape = 'u32[]', space=smem, size = 0x4, offset = 0x4, fixed_abs, tag = 'smem constant byte address 0x4 - core index']
  #allocation1 [shape = 'u32[144,128]{1,0:T(1,128)}', space=vmem, size = 0x12000, scoped, tag = 'internal scratch']
  %s0 = inlined_call_operand.vmem [shape: f32[8,128], index: 0, kind: input, shape index: {}]
  %s1 = inlined_call_operand.hbm [shape: bf16[4,128,128], index: 1, kind: input, shape index: {}]
  %s2 = inlined_call_operand.vmem [shape: f32[8,128], index: 2, kind: input, shape index: {}]
  %s3 = inlined_call_operand.vmem [shape: f32[8,128], index: 3, kind: output, shape index: {}]
  %s4 = sld [smem:[#allocation0]]
  $region26: #{fwd.1} parent=0
    _
  %s6 = ssub.s32 1, %s4
  %s7 = scalar_select 0, %s6, %s4
  $region1: #{fwd.1} parent=0
    #allocation2 [shape = 'u8[131072]{0}', space=vmem, size = 0x20000, scoped, tag = 'input window, operand 1, single buffered']
    #allocation3 [shape = 's32[1]{0}', space=sflag, size = 0x4, scoped, tag = 'scoped memory for fwd.1']
    %8 = vsyncpa [#allocation3], 0
    // Predicated region
    $region2: #{fwd.1} parent=1 // pred_check
      _
    $region3: #{fwd.1} parent=1 // pred_check_branch
      %10 = sbr.rel (0) target = $region5
    $region4: #{fwd.1} parent=1 // pred_region
      _
    $region5: #{fwd.1} parent=1 // pred_fallthru
      _
    // Predicated region
    $region6: #{fwd.1} parent=1 // pred_check
      _
    $region7: #{fwd.1} parent=1 // pred_check_branch
      %12 = sbr.rel (0) target = $region9
    $region8: #{fwd.1} parent=1 // pred_region
      %s14 = ssub.s32 4096, 4096
      %15 = vsyncadd [#allocation3], %s14
      %s16 = sshll.u32 [#allocation2], 4
      %s17 = int_to_ptr.vmem [resolvable:$true] %s16
      %22 = dma.hbm_to_vmem [thread:$0]  %s1, 4096, %s17, [#allocation3], 64, 64, 4
    $region9: #{fwd.1} parent=1 // pred_fallthru
      _
    // Predicated region
    $region10: #{fwd.1} parent=1 // pred_check
      _
    $region11: #{fwd.1} parent=1 // pred_check_branch
      %24 = sbr.rel (0) target = $region13
    $region12: #{fwd.1} parent=1 // pred_region
      _
    $region13: #{fwd.1} parent=1 // pred_fallthru
      _
    // Predicated region
    $region14: #{fwd.1} parent=1 // pred_check
      _
    $region15: #{fwd.1} parent=1 // pred_check_branch
      %26 = sbr.rel (0) target = $region17
    $region16: #{fwd.1} parent=1 // pred_region
      %27 = dma.done [#allocation3], 4096
    $region17: #{fwd.1} parent=1 // pred_fallthru
      _
    %v29 = vld [vmem:[%s2] sm:$0xff]
    %v30 = vld [vmem:[%s0] sm:$0xff]
    %v31 = vld [vmem:[#allocation2] sm:$0xf]
    %v32 = vld [vmem:[#allocation2 + $0x4] sm:$0xf]
    %v33 = vld [vmem:[#allocation2 + $0x8] sm:$0xf]
    %v34 = vld [vmem:[#allocation2 + $0xc] sm:$0xf]
    %v35 = vld [vmem:[#allocation2 + $0x10] sm:$0xf]
    %v36 = vld [vmem:[#allocation2 + $0x14] sm:$0xf]
    %v37 = vld [vmem:[#allocation2 + $0x18] sm:$0xf]
    %v38 = vld [vmem:[#allocation2 + $0x1c] sm:$0xf]
    %v39 = vld [vmem:[#allocation2 + $0x20] sm:$0xf]
    %v40 = vld [vmem:[#allocation2 + $0x24] sm:$0xf]
    %v41 = vld [vmem:[#allocation2 + $0x28] sm:$0xf]
    %v42 = vld [vmem:[#allocation2 + $0x2c] sm:$0xf]
    %v43 = vld [vmem:[#allocation2 + $0x30] sm:$0xf]
    %v44 = vld [vmem:[#allocation2 + $0x34] sm:$0xf]
    %v45 = vld [vmem:[#allocation2 + $0x38] sm:$0xf]
    %v46 = vld [vmem:[#allocation2 + $0x3c] sm:$0xf]
    %v47 = vpack.c.bf16 %v30, %v30
    %v48 = vlaneseq
    %v49 = vshrl.u32 %v48, 7
    %v50 = vsub.s32 0, %v49
    %v51 = vrot.slane %v29, %v50
    %v68 = vunpack.c.l.b16 %v31
    %v69 = vunpack.c.l.b16 %v32
    %v70 = vunpack.c.l.b16 %v33
    %v71 = vunpack.c.l.b16 %v34
    %v72 = vunpack.c.l.b16 %v35
    %v73 = vunpack.c.l.b16 %v36
    %v74 = vunpack.c.l.b16 %v37
    %v75 = vunpack.c.l.b16 %v38
    %v76 = vunpack.c.l.b16 %v39
    %v77 = vunpack.c.l.b16 %v40
    %v78 = vunpack.c.l.b16 %v41
    %v79 = vunpack.c.l.b16 %v42
    %v80 = vunpack.c.l.b16 %v43
    %v81 = vunpack.c.l.b16 %v44
    %v82 = vunpack.c.l.b16 %v45
    %v83 = vunpack.c.l.b16 %v46
    %v84 = vpack.c.b16 %v69, %v68
    %v85 = vpack.c.b16 %v71, %v70
    %v86 = vpack.c.b16 %v73, %v72
    %v87 = vpack.c.b16 %v75, %v74
    %v88 = vpack.c.b16 %v77, %v76
    %v89 = vpack.c.b16 %v79, %v78
    %v90 = vpack.c.b16 %v81, %v80
    %v91 = vpack.c.b16 %v83, %v82
    %100 = vmatprep.subr.bf16.mxu0 0
    %101 = vmatpush1.bf16.msra.mxu0 %v91
    %102 = vmatprep.subr.bf16.mxu0 0
    %103 = vmatpush1.bf16.msra.mxu0 %v90
    %104 = vmatprep.subr.bf16.mxu0 0
    %105 = vmatpush1.bf16.msra.mxu0 %v89
    %106 = vmatprep.subr.bf16.mxu0 0
    %107 = vmatpush1.bf16.msra.mxu0 %v88
    %108 = vmatprep.subr.bf16.mxu0 0
    %109 = vmatpush1.bf16.msra.mxu0 %v87
    %110 = vmatprep.subr.bf16.mxu0 0
    %111 = vmatpush1.bf16.msra.mxu0 %v86
    %112 = vmatprep.subr.bf16.mxu0 0
    %113 = vmatpush1.bf16.msra.mxu0 %v85
    %114 = vmatprep.subr.bf16.mxu0 0
    %115 = vmatpush1.bf16.msra.mxu0 %v84
    %116 = vmatprep.subr.bf16.mxu0 0
    %117 = vmatpush2.bf16.msra.mxu0 0
    %118 = vmatprep.subr.bf16.mxu0 0
    %119 = vmatpush2.bf16.msra.mxu0 0
    %120 = vmatprep.subr.bf16.mxu0 0
    %121 = vmatpush2.bf16.msra.mxu0 0
    %122 = vmatprep.subr.bf16.mxu0 0
    %123 = vmatpush2.bf16.msra.mxu0 0
    %124 = vmatprep.subr.bf16.mxu0 0
    %125 = vmatpush2.bf16.msra.mxu0 0
    %126 = vmatprep.subr.bf16.mxu0 0
    %127 = vmatpush2.bf16.msra.mxu0 0
    %128 = vmatprep.subr.bf16.mxu0 0
    %129 = vmatpush2.bf16.msra.mxu0 0
    %130 = vmatprep.subr.bf16.mxu0 0
    %131 = vmatpush2.bf16.msra.mxu0 0
    %132 = vmatprep.mubr.bf16.mxu0 0
    %133 = vmatmul.mubr.bf16.gmra.mxu0 %v47
    %v134 = vpop.f32.mrf.mxu0
    %v135 = vadd.f32 %v51, %v134
    %v136 = vpop.f32.mrf.mxu0
    %v137 = vpop.f32.mrf.mxu0
    %v138 = vpop.f32.mrf.mxu0
    %139 = vdwg.mxu0
    %vm140 = vcmp.ge.f32.partialorder %v135, 0.0
    %v141 = vlaneseq
    %v142 = vshrl.u32 %v141, 7
    %v143 = vsub.s32 1, %v142
    %v144 = vrot.slane %v29, %v143
    %v145 = vmul.f32 %v144, %v135
    %v146 = vsel %vm140, %v135, %v145
    %s147 = scalar_lea.vmem [#allocation2], 64
    %v148 = vld [vmem:[%s147] sm:$0xf]
    %v149 = vld [vmem:[%s147 + $0x4] sm:$0xf]
    %v150 = vld [vmem:[%s147 + $0x8] sm:$0xf]
    %v151 = vld [vmem:[%s147 + $0xc] sm:$0xf]
    %v152 = vld [vmem:[%s147 + $0x10] sm:$0xf]
    %v153 = vld [vmem:[%s147 + $0x14] sm:$0xf]
    %v154 = vld [vmem:[%s147 + $0x18] sm:$0xf]
    %v155 = vld [vmem:[%s147 + $0x1c] sm:$0xf]
    %v156 = vld [vmem:[%s147 + $0x20] sm:$0xf]
    %v157 = vld [vmem:[%s147 + $0x24] sm:$0xf]
    %v158 = vld [vmem:[%s147 + $0x28] sm:$0xf]
    %v159 = vld [vmem:[%s147 + $0x2c] sm:$0xf]
    %v160 = vld [vmem:[%s147 + $0x30] sm:$0xf]
    %v161 = vld [vmem:[%s147 + $0x34] sm:$0xf]
    %v162 = vld [vmem:[%s147 + $0x38] sm:$0xf]
    %v163 = vld [vmem:[%s147 + $0x3c] sm:$0xf]
    %v164 = vpack.c.bf16 %v146, %v146
    %v165 = vlaneseq
    %v166 = vshrl.u32 %v165, 7
    %v167 = vsub.s32 2, %v166
    %v168 = vrot.slane %v29, %v167
    %v185 = vunpack.c.l.b16 %v148
    %v186 = vunpack.c.l.b16 %v149
    %v187 = vunpack.c.l.b16 %v150
    %v188 = vunpack.c.l.b16 %v151
    %v189 = vunpack.c.l.b16 %v152
    %v190 = vunpack.c.l.b16 %v153
    %v191 = vunpack.c.l.b16 %v154
    %v192 = vunpack.c.l.b16 %v155
    %v193 = vunpack.c.l.b16 %v156
    %v194 = vunpack.c.l.b16 %v157
    %v195 = vunpack.c.l.b16 %v158
    %v196 = vunpack.c.l.b16 %v159
    %v197 = vunpack.c.l.b16 %v160
    %v198 = vunpack.c.l.b16 %v161
    %v199 = vunpack.c.l.b16 %v162
    %v200 = vunpack.c.l.b16 %v163
    %v201 = vpack.c.b16 %v186, %v185
    %v202 = vpack.c.b16 %v188, %v187
    %v203 = vpack.c.b16 %v190, %v189
    %v204 = vpack.c.b16 %v192, %v191
    %v205 = vpack.c.b16 %v194, %v193
    %v206 = vpack.c.b16 %v196, %v195
    %v207 = vpack.c.b16 %v198, %v197
    %v208 = vpack.c.b16 %v200, %v199
    %217 = vmatprep.subr.bf16.mxu0 0
    %218 = vmatpush1.bf16.msra.mxu0 %v208
    %219 = vmatprep.subr.bf16.mxu0 0
    %220 = vmatpush1.bf16.msra.mxu0 %v207
    %221 = vmatprep.subr.bf16.mxu0 0
    %222 = vmatpush1.bf16.msra.mxu0 %v206
    %223 = vmatprep.subr.bf16.mxu0 0
    %224 = vmatpush1.bf16.msra.mxu0 %v205
    %225 = vmatprep.subr.bf16.mxu0 0
    %226 = vmatpush1.bf16.msra.mxu0 %v204
    %227 = vmatprep.subr.bf16.mxu0 0
    %228 = vmatpush1.bf16.msra.mxu0 %v203
    %229 = vmatprep.subr.bf16.mxu0 0
    %230 = vmatpush1.bf16.msra.mxu0 %v202
    %231 = vmatprep.subr.bf16.mxu0 0
    %232 = vmatpush1.bf16.msra.mxu0 %v201
    %233 = vmatprep.subr.bf16.mxu0 0
    %234 = vmatpush2.bf16.msra.mxu0 0
    %235 = vmatprep.subr.bf16.mxu0 0
    %236 = vmatpush2.bf16.msra.mxu0 0
    %237 = vmatprep.subr.bf16.mxu0 0
    %238 = vmatpush2.bf16.msra.mxu0 0
    %239 = vmatprep.subr.bf16.mxu0 0
    %240 = vmatpush2.bf16.msra.mxu0 0
    %241 = vmatprep.subr.bf16.mxu0 0
    %242 = vmatpush2.bf16.msra.mxu0 0
    %243 = vmatprep.subr.bf16.mxu0 0
    %244 = vmatpush2.bf16.msra.mxu0 0
    %245 = vmatprep.subr.bf16.mxu0 0
    %246 = vmatpush2.bf16.msra.mxu0 0
    %247 = vmatprep.subr.bf16.mxu0 0
    %248 = vmatpush2.bf16.msra.mxu0 0
    %249 = vmatprep.mubr.bf16.mxu0 0
    %250 = vmatmul.mubr.bf16.gmra.mxu0 %v164
    %v251 = vpop.f32.mrf.mxu0
    %v252 = vadd.f32 %v168, %v251
    %v253 = vpop.f32.mrf.mxu0
    %v254 = vpop.f32.mrf.mxu0
    %v255 = vpop.f32.mrf.mxu0
    %256 = vdwg.mxu0
    %vm257 = vcmp.ge.f32.partialorder %v252, 0.0
    %v258 = vlaneseq
    %v259 = vshrl.u32 %v258, 7
    %v260 = vsub.s32 3, %v259
    %v261 = vrot.slane %v29, %v260
    %v262 = vmul.f32 %v261, %v252
    %v263 = vsel %vm257, %v252, %v262
    %s264 = scalar_lea.vmem [#allocation2], 128
    %v265 = vld [vmem:[%s264] sm:$0xf]
    %v266 = vld [vmem:[%s264 + $0x4] sm:$0xf]
    %v267 = vld [vmem:[%s264 + $0x8] sm:$0xf]
    %v268 = vld [vmem:[%s264 + $0xc] sm:$0xf]
    %v269 = vld [vmem:[%s264 + $0x10] sm:$0xf]
    %v270 = vld [vmem:[%s264 + $0x14] sm:$0xf]
    %v271 = vld [vmem:[%s264 + $0x18] sm:$0xf]
    %v272 = vld [vmem:[%s264 + $0x1c] sm:$0xf]
    %v273 = vld [vmem:[%s264 + $0x20] sm:$0xf]
    %v274 = vld [vmem:[%s264 + $0x24] sm:$0xf]
    %v275 = vld [vmem:[%s264 + $0x28] sm:$0xf]
    %v276 = vld [vmem:[%s264 + $0x2c] sm:$0xf]
    %v277 = vld [vmem:[%s264 + $0x30] sm:$0xf]
    %v278 = vld [vmem:[%s264 + $0x34] sm:$0xf]
    %v279 = vld [vmem:[%s264 + $0x38] sm:$0xf]
    %v280 = vld [vmem:[%s264 + $0x3c] sm:$0xf]
    %v281 = vpack.c.bf16 %v263, %v263
    %v282 = vlaneseq
    %v283 = vshrl.u32 %v282, 7
    %v284 = vsub.s32 4, %v283
    %v285 = vrot.slane %v29, %v284
    %v302 = vunpack.c.l.b16 %v265
    %v303 = vunpack.c.l.b16 %v266
    %v304 = vunpack.c.l.b16 %v267
    %v305 = vunpack.c.l.b16 %v268
    %v306 = vunpack.c.l.b16 %v269
    %v307 = vunpack.c.l.b16 %v270
    %v308 = vunpack.c.l.b16 %v271
    %v309 = vunpack.c.l.b16 %v272
    %v310 = vunpack.c.l.b16 %v273
    %v311 = vunpack.c.l.b16 %v274
    %v312 = vunpack.c.l.b16 %v275
    %v313 = vunpack.c.l.b16 %v276
    %v314 = vunpack.c.l.b16 %v277
    %v315 = vunpack.c.l.b16 %v278
    %v316 = vunpack.c.l.b16 %v279
    %v317 = vunpack.c.l.b16 %v280
    %v318 = vpack.c.b16 %v303, %v302
    %v319 = vpack.c.b16 %v305, %v304
    %v320 = vpack.c.b16 %v307, %v306
    %v321 = vpack.c.b16 %v309, %v308
    %v322 = vpack.c.b16 %v311, %v310
    %v323 = vpack.c.b16 %v313, %v312
    %v324 = vpack.c.b16 %v315, %v314
    %v325 = vpack.c.b16 %v317, %v316
    %334 = vmatprep.subr.bf16.mxu0 0
    %335 = vmatpush1.bf16.msra.mxu0 %v325
    %336 = vmatprep.subr.bf16.mxu0 0
    %337 = vmatpush1.bf16.msra.mxu0 %v324
    %338 = vmatprep.subr.bf16.mxu0 0
    %339 = vmatpush1.bf16.msra.mxu0 %v323
    %340 = vmatprep.subr.bf16.mxu0 0
    %341 = vmatpush1.bf16.msra.mxu0 %v322
    %342 = vmatprep.subr.bf16.mxu0 0
    %343 = vmatpush1.bf16.msra.mxu0 %v321
    %344 = vmatprep.subr.bf16.mxu0 0
    %345 = vmatpush1.bf16.msra.mxu0 %v320
    %346 = vmatprep.subr.bf16.mxu0 0
    %347 = vmatpush1.bf16.msra.mxu0 %v319
    %348 = vmatprep.subr.bf16.mxu0 0
    %349 = vmatpush1.bf16.msra.mxu0 %v318
    %350 = vmatprep.subr.bf16.mxu0 0
    %351 = vmatpush2.bf16.msra.mxu0 0
    %352 = vmatprep.subr.bf16.mxu0 0
    %353 = vmatpush2.bf16.msra.mxu0 0
    %354 = vmatprep.subr.bf16.mxu0 0
    %355 = vmatpush2.bf16.msra.mxu0 0
    %356 = vmatprep.subr.bf16.mxu0 0
    %357 = vmatpush2.bf16.msra.mxu0 0
    %358 = vmatprep.subr.bf16.mxu0 0
    %359 = vmatpush2.bf16.msra.mxu0 0
    %360 = vmatprep.subr.bf16.mxu0 0
    %361 = vmatpush2.bf16.msra.mxu0 0
    %362 = vmatprep.subr.bf16.mxu0 0
    %363 = vmatpush2.bf16.msra.mxu0 0
    %364 = vmatprep.subr.bf16.mxu0 0
    %365 = vmatpush2.bf16.msra.mxu0 0
    %366 = vmatprep.mubr.bf16.mxu0 0
    %367 = vmatmul.mubr.bf16.gmra.mxu0 %v281
    %v368 = vpop.f32.mrf.mxu0
    %v369 = vadd.f32 %v285, %v368
    %v370 = vpop.f32.mrf.mxu0
    %v371 = vpop.f32.mrf.mxu0
    %v372 = vpop.f32.mrf.mxu0
    %373 = vdwg.mxu0
    %vm374 = vcmp.ge.f32.partialorder %v369, 0.0
    %v375 = vlaneseq
    %v376 = vshrl.u32 %v375, 7
    %v377 = vsub.s32 5, %v376
    %v378 = vrot.slane %v29, %v377
    %v379 = vmul.f32 %v378, %v369
    %v380 = vsel %vm374, %v369, %v379
    %s381 = scalar_lea.vmem [#allocation2], 192
    %v382 = vld [vmem:[%s381] sm:$0xf]
    %v383 = vld [vmem:[%s381 + $0x4] sm:$0xf]
    %v384 = vld [vmem:[%s381 + $0x8] sm:$0xf]
    %v385 = vld [vmem:[%s381 + $0xc] sm:$0xf]
    %v386 = vld [vmem:[%s381 + $0x10] sm:$0xf]
    %v387 = vld [vmem:[%s381 + $0x14] sm:$0xf]
    %v388 = vld [vmem:[%s381 + $0x18] sm:$0xf]
    %v389 = vld [vmem:[%s381 + $0x1c] sm:$0xf]
    %v390 = vld [vmem:[%s381 + $0x20] sm:$0xf]
    %v391 = vld [vmem:[%s381 + $0x24] sm:$0xf]
    %v392 = vld [vmem:[%s381 + $0x28] sm:$0xf]
    %v393 = vld [vmem:[%s381 + $0x2c] sm:$0xf]
    %v394 = vld [vmem:[%s381 + $0x30] sm:$0xf]
    %v395 = vld [vmem:[%s381 + $0x34] sm:$0xf]
    %v396 = vld [vmem:[%s381 + $0x38] sm:$0xf]
    %v397 = vld [vmem:[%s381 + $0x3c] sm:$0xf]
    %v398 = vpack.c.bf16 %v380, %v380
    %v399 = vlaneseq
    %v400 = vshrl.u32 %v399, 7
    %v401 = vsub.s32 6, %v400
    %v402 = vrot.slane %v29, %v401
    %v419 = vunpack.c.l.b16 %v382
    %v420 = vunpack.c.l.b16 %v383
    %v421 = vunpack.c.l.b16 %v384
    %v422 = vunpack.c.l.b16 %v385
    %v423 = vunpack.c.l.b16 %v386
    %v424 = vunpack.c.l.b16 %v387
    %v425 = vunpack.c.l.b16 %v388
    %v426 = vunpack.c.l.b16 %v389
    %v427 = vunpack.c.l.b16 %v390
    %v428 = vunpack.c.l.b16 %v391
    %v429 = vunpack.c.l.b16 %v392
    %v430 = vunpack.c.l.b16 %v393
    %v431 = vunpack.c.l.b16 %v394
    %v432 = vunpack.c.l.b16 %v395
    %v433 = vunpack.c.l.b16 %v396
    %v434 = vunpack.c.l.b16 %v397
    %v435 = vpack.c.b16 %v420, %v419
    %v436 = vpack.c.b16 %v422, %v421
    %v437 = vpack.c.b16 %v424, %v423
    %v438 = vpack.c.b16 %v426, %v425
    %v439 = vpack.c.b16 %v428, %v427
    %v440 = vpack.c.b16 %v430, %v429
    %v441 = vpack.c.b16 %v432, %v431
    %v442 = vpack.c.b16 %v434, %v433
    %451 = vmatprep.subr.bf16.mxu0 0
    %452 = vmatpush1.bf16.msra.mxu0 %v442
    %453 = vmatprep.subr.bf16.mxu0 0
    %454 = vmatpush1.bf16.msra.mxu0 %v441
    %455 = vmatprep.subr.bf16.mxu0 0
    %456 = vmatpush1.bf16.msra.mxu0 %v440
    %457 = vmatprep.subr.bf16.mxu0 0
    %458 = vmatpush1.bf16.msra.mxu0 %v439
    %459 = vmatprep.subr.bf16.mxu0 0
    %460 = vmatpush1.bf16.msra.mxu0 %v438
    %461 = vmatprep.subr.bf16.mxu0 0
    %462 = vmatpush1.bf16.msra.mxu0 %v437
    %463 = vmatprep.subr.bf16.mxu0 0
    %464 = vmatpush1.bf16.msra.mxu0 %v436
    %465 = vmatprep.subr.bf16.mxu0 0
    %466 = vmatpush1.bf16.msra.mxu0 %v435
    %467 = vmatprep.subr.bf16.mxu0 0
    %468 = vmatpush2.bf16.msra.mxu0 0
    %469 = vmatprep.subr.bf16.mxu0 0
    %470 = vmatpush2.bf16.msra.mxu0 0
    %471 = vmatprep.subr.bf16.mxu0 0
    %472 = vmatpush2.bf16.msra.mxu0 0
    %473 = vmatprep.subr.bf16.mxu0 0
    %474 = vmatpush2.bf16.msra.mxu0 0
    %475 = vmatprep.subr.bf16.mxu0 0
    %476 = vmatpush2.bf16.msra.mxu0 0
    %477 = vmatprep.subr.bf16.mxu0 0
    %478 = vmatpush2.bf16.msra.mxu0 0
    %479 = vmatprep.subr.bf16.mxu0 0
    %480 = vmatpush2.bf16.msra.mxu0 0
    %481 = vmatprep.subr.bf16.mxu0 0
    %482 = vmatpush2.bf16.msra.mxu0 0
    %483 = vmatprep.mubr.bf16.mxu0 0
    %484 = vmatmul.mubr.bf16.gmra.mxu0 %v398
    %v485 = vpop.f32.mrf.mxu0
    %v486 = vadd.f32 %v402, %v485
    %v487 = vpop.f32.mrf.mxu0
    %v488 = vpop.f32.mrf.mxu0
    %v489 = vpop.f32.mrf.mxu0
    %490 = vdwg.mxu0
    %491 = vst [vmem:[%s3] sm:$0xff] %v486
    // Predicated region
    $region18: #{fwd.1} parent=1 // pred_check
      _
    $region19: #{fwd.1} parent=1 // pred_check_branch
      %493 = sbr.rel (0) target = $region21
    $region20: #{fwd.1} parent=1 // pred_region
      _
    $region21: #{fwd.1} parent=1 // pred_fallthru
      _
    // Predicated region
    $region22: #{fwd.1} parent=1 // pred_check
      _
    $region23: #{fwd.1} parent=1 // pred_check_branch
      %495 = sbr.rel (0) target = $region25
    $region24: #{fwd.1} parent=1 // pred_region
      _
    $region25: #{fwd.1} parent=1 // pred_fallthru
      _
    %496 = vsyncpa [#allocation3], 1

</llo_original>
